<compile_context>
chip_gen: v7x
topology: tpu7x:2x2x1
jax: 0.10.0
libtpu: 0.0.40
codegen_flags: <defaults>
</compile_context>

<pallas_src>
import functools

import jax
import jax.numpy as jnp
from jax import lax
from jax.experimental import pallas as pl
from jax.experimental.pallas import tpu as pltpu


def _film_conv_kernel(patches_ref, w_ref, gamma_ref, beta_ref, out_ref,
                      *, negative_slope, apply_sigmoid):
    # patches_ref: (1, K, PT)      w_ref: (Cout, K)
    # gamma_ref / beta_ref: (1, Cout, 1)     out_ref: (1, Cout, PT)
    x = patches_ref[0]                                       # (K, PT)
    w = w_ref[...]                                           # (Cout, K)
    y = jnp.dot(w, x, preferred_element_type=jnp.float32)    # (Cout, PT), f32 acc
    y = gamma_ref[0] * y + beta_ref[0]                       # FiLM (conv bias folded)
    y = jnp.where(y >= 0, y, negative_slope * y)             # LeakyReLU(0.2)
    if apply_sigmoid:
        y = jax.nn.sigmoid(y)                                # EUP
    out_ref[0] = y.astype(out_ref.dtype)


def film_conv_layer(x_nchw, ctx, conv_w, conv_b, film_gw, film_gb, film_bw, film_bb,
                    *, stride, padding, negative_slope=0.2, apply_sigmoid=False,
                    compute_dtype=jnp.bfloat16, out_dtype=None, p_tile=1024):
    B, Cin, H, W = x_nchw.shape
    Cout, _, kh, kw = conv_w.shape
    K = Cin * kh * kw
    if out_dtype is None:
        out_dtype = compute_dtype

    # Patch extraction -> (B, K, P) with K ordered (c, kh, kw) (matches the OIHW
    # weight flattening) and P = Ho*Wo on the last (lane) axis.  Single fused XLA
    # conv; the identity kernel makes it exact, HIGHEST keeps it exact for f32.
    patches = lax.conv_general_dilated_patches(
        x_nchw.astype(compute_dtype), (kh, kw), (stride, stride),
        [(padding, padding), (padding, padding)],
        dimension_numbers=("NCHW", "OIHW", "NCHW"),
        precision=lax.Precision.HIGHEST)
    Ho = (H + 2 * padding - kh) // stride + 1
    Wo = (W + 2 * padding - kw) // stride + 1
    P = Ho * Wo
    patches = patches.reshape(B, K, P)                       # contiguous, no transpose

    # Hoisted FiLM affine params (tiny matmuls stay in XLA, f32); fold conv bias:
    #   gamma*(conv + b) + beta == gamma*conv + (gamma*b + beta)
    gamma = ctx @ film_gw + film_gb                          # (B, Cout)
    beta = gamma * conv_b[None, :] + (ctx @ film_bw + film_bb)
    gamma = gamma.reshape(B, Cout, 1)
    beta = beta.reshape(B, Cout, 1)

    w_mat = conv_w.reshape(Cout, K).astype(compute_dtype)    # (Cout, K)

    pt = P if P <= p_tile else p_tile                        # full dim, or 128-aligned tile
    grid = (B, pl.cdiv(P, pt))

    kernel = functools.partial(_film_conv_kernel,
                               negative_slope=negative_slope,
                               apply_sigmoid=apply_sigmoid)

    out = pl.pallas_call(
        kernel,
        out_shape=jax.ShapeDtypeStruct((B, Cout, P), out_dtype),
        grid=grid,
        in_specs=[
            pl.BlockSpec((1, K, pt), lambda b, p: (b, 0, p)),     # patches
            pl.BlockSpec((Cout, K), lambda b, p: (0, 0)),         # conv weight (resident)
            pl.BlockSpec((1, Cout, 1), lambda b, p: (b, 0, 0)),   # FiLM gamma
            pl.BlockSpec((1, Cout, 1), lambda b, p: (b, 0, 0)),   # FiLM beta (+bias)
        ],
        out_specs=pl.BlockSpec((1, Cout, pt), lambda b, p: (b, 0, p)),
        compiler_params=pltpu.CompilerParams(
            dimension_semantics=("parallel", "parallel"),
            vmem_limit_bytes=48 * 1024 * 1024),
    )(patches, w_mat, gamma, beta)

    return out.reshape(B, Cout, Ho, Wo)                      # already NCHW


def init_params(key, in_ch, feat_ch, dim_ctx, out_ch=1):
    """Deterministic synthetic parameters (conv weights ~ N(0, 0.02) like _init_weights)."""
    layer_defs = [
        dict(cin=in_ch,       cout=feat_ch,     k=4, s=2, p=1),
        dict(cin=feat_ch,     cout=2 * feat_ch, k=4, s=2, p=1),
        dict(cin=2 * feat_ch, cout=4 * feat_ch, k=4, s=2, p=1),
        dict(cin=4 * feat_ch, cout=out_ch,      k=3, s=1, p=0),
    ]
    params = []
    for ld in layer_defs:
        key, k1, k2, k3, k4, k5, k6 = jax.random.split(key, 7)
        cin, cout, kk = ld["cin"], ld["cout"], ld["k"]
        params.append(dict(
            conv_w=0.02 * jax.random.normal(k1, (cout, cin, kk, kk), jnp.float32),
            conv_b=0.05 * jax.random.normal(k2, (cout,), jnp.float32),
            film_gw=0.1 * jax.random.normal(k3, (dim_ctx, cout), jnp.float32),
            film_gb=1.0 + 0.1 * jax.random.normal(k4, (cout,), jnp.float32),
            film_bw=0.1 * jax.random.normal(k5, (dim_ctx, cout), jnp.float32),
            film_bb=0.1 * jax.random.normal(k6, (cout,), jnp.float32),
            stride=ld["s"], padding=ld["p"],
        ))
    return params


def context_aware_discriminator(x, ctx, params, *, compute_dtype=jnp.bfloat16):
    n = len(params)
    for i, p in enumerate(params):
        last = (i == n - 1)
        x = film_conv_layer(
            x, ctx, p["conv_w"], p["conv_b"],
            p["film_gw"], p["film_gb"], p["film_bw"], p["film_bb"],
            stride=p["stride"], padding=p["padding"],
            apply_sigmoid=last,                             # final sigmoid fused in-kernel
            compute_dtype=compute_dtype,
            # intermediates stored in compute_dtype (they'd be cast for the next
            # matmul anyway); final discriminator output in f32.
            out_dtype=jnp.float32 if last else compute_dtype)
    return x


def _reference(x, ctx, params):
    """Pure-JAX reference (lax.conv at HIGHEST precision) for correctness checks."""
    n = len(params)
    for i, p in enumerate(params):
        y = lax.conv_general_dilated(
            x, p["conv_w"], (p["stride"], p["stride"]),
            [(p["padding"], p["padding"])] * 2,
            dimension_numbers=("NCHW", "OIHW", "NCHW"),
            precision=lax.Precision.HIGHEST)
        y = y + p["conv_b"][None, :, None, None]
        gamma = ctx @ p["film_gw"] + p["film_gb"]
        beta = ctx @ p["film_bw"] + p["film_bb"]
        y = gamma[:, :, None, None] * y + beta[:, :, None, None]
        y = jnp.where(y >= 0, y, 0.2 * y)
        if i == n - 1:
            y = jax.nn.sigmoid(y)
        x = y
    return x


if __name__ == "__main__":
    B, in_ch, feat_ch, dim_ctx, out_ch = 2, 4, 8, 8, 1
    H = W = 32   # 32 -> 16 -> 8 -> 4 -> (k=3,s=1,p=0) -> 2

    key = jax.random.PRNGKey(0)
    kx, kc, kp = jax.random.split(key, 3)
    x = jax.random.normal(kx, (B, in_ch, H, W), jnp.float32)
    ctx = jax.random.normal(kc, (B, dim_ctx), jnp.float32)
    params = init_params(kp, in_ch, feat_ch, dim_ctx, out_ch)

    ref = jax.block_until_ready(_reference(x, ctx, params))

    # f32-operand path: tight check, catches any ordering / layout regression
    # (those produce O(0.1) errors).  Tolerance is 1e-3 rather than 1e-5 only to
    # stay robust to the MXU's multi-pass f32 emulation.
    out_f32 = jax.block_until_ready(
        context_aware_discriminator(x, ctx, params, compute_dtype=jnp.float32))
    assert out_f32.shape == (B, out_ch, 2, 2), out_f32.shape
    assert jnp.allclose(out_f32, ref, atol=1e-3, rtol=1e-3), \
        f"f32 path: max abs diff {float(jnp.max(jnp.abs(out_f32 - ref)))}"

    # bf16-operand path (the performance configuration): loose check.
    out_bf16 = jax.block_until_ready(
        context_aware_discriminator(x, ctx, params, compute_dtype=jnp.bfloat16))
    assert out_bf16.shape == (B, out_ch, 2, 2), out_bf16.shape
    assert jnp.allclose(out_bf16, ref, atol=2e-2, rtol=2e-2), \
        f"bf16 path: max abs diff {float(jnp.max(jnp.abs(out_bf16 - ref)))}"

    print("KERNEL_OK")
</pallas_src>

<mosaic_0001>
module attributes {stable_mosaic.version = 11 : i64} {
  func.func @_film_conv_kernel(%arg0: i32, %arg1: i32, %arg2: memref<1x64x256xf32, #tpu.memory_space<vmem>>, %arg3: memref<8x64xf32, #tpu.memory_space<vmem>>, %arg4: memref<1x8x1xf32, #tpu.memory_space<vmem>>, %arg5: memref<1x8x1xf32, #tpu.memory_space<vmem>>, %arg6: memref<1x8x256xf32, #tpu.memory_space<vmem>>) attributes {dimension_semantics = [#tpu.dimension_semantics<parallel>, #tpu.dimension_semantics<parallel>], iteration_bounds = array<i64: 2, 1>, scalar_prefetch = 0 : i64, scratch_operands = 0 : i64, tpu.core_type = #tpu.core_type<tc>, window_params = [{transform_indices = @transform_0, window_bounds = array<i64: 1, 64, 256>}, {pipeline_mode = #tpu.pipeline_mode<synchronous>, transform_indices = @transform_1, window_bounds = array<i64: 8, 64>}, {transform_indices = @transform_2, window_bounds = array<i64: 1, 8, 1>}, {transform_indices = @transform_3, window_bounds = array<i64: 1, 8, 1>}, {transform_indices = @transform_4, window_bounds = array<i64: 1, 8, 256>}]} {
    %c0 = arith.constant 0 : index
    %c0_0 = arith.constant 0 : index
    %c0_1 = arith.constant 0 : index
    %0 = vector.load %arg2[%c0, %c0_0, %c0_1] : memref<1x64x256xf32, #tpu.memory_space<vmem>>, vector<1x64x256xf32>
    %1 = vector.shape_cast %0 : vector<1x64x256xf32> to vector<64x256xf32>
    %c0_2 = arith.constant 0 : index
    %c0_3 = arith.constant 0 : index
    %2 = vector.load %arg3[%c0_2, %c0_3] : memref<8x64xf32, #tpu.memory_space<vmem>>, vector<8x64xf32>
    %cst = arith.constant dense<0.000000e+00> : vector<8x256xf32>
    %3 = tpu.matmul %2, %1, %cst {dimension_numbers = #tpu.dot_dimension_numbers<[1], [0], [0], [1], [0, 0, 1, 1], [], []>} : vector<8x64xf32>, vector<64x256xf32>, vector<8x256xf32> -> vector<8x256xf32>
    %c0_4 = arith.constant 0 : index
    %c0_5 = arith.constant 0 : index
    %c0_6 = arith.constant 0 : index
    %4 = vector.load %arg4[%c0_4, %c0_5, %c0_6] : memref<1x8x1xf32, #tpu.memory_space<vmem>>, vector<1x8x1xf32>
    %5 = vector.shape_cast %4 : vector<1x8x1xf32> to vector<8x1xf32>
    %6 = vector.broadcast %5 : vector<8x1xf32> to vector<8x256xf32>
    %7 = arith.mulf %6, %3 : vector<8x256xf32>
    %c0_7 = arith.constant 0 : index
    %c0_8 = arith.constant 0 : index
    %c0_9 = arith.constant 0 : index
    %8 = vector.load %arg5[%c0_7, %c0_8, %c0_9] : memref<1x8x1xf32, #tpu.memory_space<vmem>>, vector<1x8x1xf32>
    %9 = vector.shape_cast %8 : vector<1x8x1xf32> to vector<8x1xf32>
    %10 = vector.broadcast %9 : vector<8x1xf32> to vector<8x256xf32>
    %11 = arith.addf %7, %10 : vector<8x256xf32>
    %cst_10 = arith.constant 0.000000e+00 : f32
    %12 = vector.broadcast %cst_10 : f32 to vector<8x256xf32>
    %13 = arith.cmpf oge, %11, %12 : vector<8x256xf32>
    %cst_11 = arith.constant 2.000000e-01 : f32
    %14 = vector.broadcast %cst_11 : f32 to vector<8x256xf32>
    %15 = arith.mulf %14, %11 : vector<8x256xf32>
    %16 = arith.select %13, %11, %15 : vector<8x256xi1>, vector<8x256xf32>
    %c0_12 = arith.constant 0 : index
    %c0_13 = arith.constant 0 : index
    %c0_14 = arith.constant 0 : index
    %17 = vector.load %arg6[%c0_12, %c0_13, %c0_14] : memref<1x8x256xf32, #tpu.memory_space<vmem>>, vector<1x8x256xf32>
    %18 = vector.shape_cast %17 : vector<1x8x256xf32> to vector<8x256xf32>
    %19 = vector.shape_cast %16 : vector<8x256xf32> to vector<1x8x256xf32>
    tpu.vector_store %arg6[%c0_12, %c0_13, %c0_14], %19 {strides = array<i32>} : memref<1x8x256xf32, #tpu.memory_space<vmem>>, vector<1x8x256xf32>,
    return
  }
  func.func @transform_0(%arg0: i32, %arg1: i32) -> (i32, i32, i32) {
    %c0_i32 = arith.constant 0 : i32
    %c0_i32_0 = arith.constant 0 : i32
    return %arg0, %c0_i32, %arg1 : i32, i32, i32
  }
  func.func @transform_1(%arg0: i32, %arg1: i32) -> (i32, i32) {
    %c0_i32 = arith.constant 0 : i32
    %c0_i32_0 = arith.constant 0 : i32
    %c0_i32_1 = arith.constant 0 : i32
    return %c0_i32, %c0_i32_0 : i32, i32
  }
  func.func @transform_2(%arg0: i32, %arg1: i32) -> (i32, i32, i32) {
    %c0_i32 = arith.constant 0 : i32
    %c0_i32_0 = arith.constant 0 : i32
    %c0_i32_1 = arith.constant 0 : i32
    return %arg0, %c0_i32, %c0_i32_0 : i32, i32, i32
  }
  func.func @transform_3(%arg0: i32, %arg1: i32) -> (i32, i32, i32) {
    %c0_i32 = arith.constant 0 : i32
    %c0_i32_0 = arith.constant 0 : i32
    %c0_i32_1 = arith.constant 0 : i32
    return %arg0, %c0_i32, %c0_i32_0 : i32, i32, i32
  }
  func.func @transform_4(%arg0: i32, %arg1: i32) -> (i32, i32, i32) {
    %c0_i32 = arith.constant 0 : i32
    %c0_i32_0 = arith.constant 0 : i32
    return %arg0, %c0_i32, %arg1 : i32, i32, i32
  }
}

</mosaic_0001>

<llo_original>
// kernel: tpu_custom_call.1
$region0: #{tpu_custom_call.1}
  #allocation0 [shape = 'u32[]', space=smem, size = 0x4, offset = 0x4, fixed_abs, tag = 'smem constant byte address 0x4 - core index']
  #allocation1 [shape = 'u32[144,128]{1,0:T(1,128)}', space=vmem, size = 0x12000, scoped, tag = 'internal scratch']
  %s0 = inlined_call_operand.hbm [shape: f32[2,64,256], index: 0, kind: input, shape index: {}]
  %s1 = inlined_call_operand.vmem [shape: f32[8,64], index: 1, kind: input, shape index: {}]
  %s2 = inlined_call_operand.vmem [shape: f32[2,8,1], index: 2, kind: input, shape index: {}]
  %s3 = inlined_call_operand.vmem [shape: f32[2,8,1], index: 3, kind: input, shape index: {}]
  %s4 = inlined_call_operand.hbm [shape: f32[2,8,256], index: 4, kind: output, shape index: {}]
  %s5 = sld [smem:[#allocation0]]
  $region53: #{tpu_custom_call.1} parent=0
    _
  %s7 = ssub.s32 1, %s5
  %s8 = scalar_select 0, %s7, %s5
  $region1: #{tpu_custom_call.1} parent=0
    #allocation2 [shape = 'u8[131072]{0}', space=vmem, size = 0x20000, scoped, tag = 'input window, operand 0']
    #allocation3 [shape = 's32[2]{0}', space=sflag, size = 0x8, scoped, tag = 'scoped memory for tpu_custom_call.1']
    #allocation4 [shape = 's32[2]{0}', space=sflag, size = 0x8, scoped, tag = 'scoped memory for tpu_custom_call.1']
    #allocation5 [shape = 'u8[16384]{0}', space=vmem, size = 0x4000, scoped, tag = 'output window, operand 0']
    %9 = vsyncpa [#allocation3], 0
    %s10 = scalar_lea.sflag [#allocation3], 1
    %11 = vsyncpa %s10, 0
    %12 = vsyncpa [#allocation4], 0
    %s13 = scalar_lea.sflag [#allocation4], 1
    %14 = vsyncpa %s13, 0
    loop: start=0, step=1, limit=4
    $region2: #{tpu_custom_call.1} parent=1 // loop_pre_header
      _
    $region3: #{tpu_custom_call.1} parent=1 // loop_header
      %s16 = sphi 0, %s20
      %p17 = scmp.ge.s32.totalorder %s16, 4
      %s23 = sphi 0, %s35
      %s24 = sphi 0, %s31
      %s25 = sphi 0, %s23
      %s26 = sphi 0, %s24
      %s27 = sphi 0, %s25
      %s28 = sphi 0, %s26
      %s40 = sphi 0, %s42
      %s43 = sphi 0, %s40
      %s44 = sphi 0, %s43
      %s60 = sphi 0, %s44
      %s64 = sphi 0, %s64
      %s66 = sphi 0, %s64
      %s67 = sphi 0, %s66
      %s81 = sphi 0, %s67
      %s87 = sphi 0, %s89
      %s90 = sphi 0, %s87
      %s91 = sphi 0, %s90
      %s107 = sphi 0, %s91
      %s113 = sphi 0, %s115
      %s116 = sphi 0, %s113
      %s117 = sphi 0, %s116
      %s133 = sphi 0, %s117
      %s141 = sphi 0, %s143
      %s144 = sphi 0, %s141
      %s145 = sphi 0, %s144
      %s161 = sphi 0, %s145
    $region4: #{tpu_custom_call.1} parent=1 // loop_header_branch
      %19 = sbr.rel (%p17) target = $region8
    $region5: #{tpu_custom_call.1} parent=1 // loop_body
      %s21 = ssub.s32 %s16, 1
      %s22 = ssub.s32 %s16, 2
      %s29 = sadd.s32 1, %s24
      %p30 = scmp.ge.s32.totalorder %s29, 1
      %s31 = scalar_select %p30, 0, %s29
      %s32 = sadd.s32 1, %s23
      %s33 = scalar_select %p30, %s32, %s23
      %p34 = scmp.ge.s32.totalorder %s33, 2
      %s35 = scalar_select %p34, 0, %s33
      %s36 = ssub.s32 %s23, %s35
      %s37 = ssub.s32 %s24, %s31
      %s38 = sor.u32 %s36, %s37
      %p39 = scmp.eq.s32.totalorder %s38, 0
      %s41 = sadd.s32 %s40, 1
      %s42 = scalar_select %p39, %s40, %s41
      %p45 = pneg %p39
      %p46 = scmp.eq.s32.totalorder %s16, 1
      %p47 = por %p45, %p46
      %p48 = scmp.ne.s32.totalorder %s40, %s43
      %p49 = scmp.eq.s32.totalorder %s16, 0
      %p50 = por %p48, %p49
      %p51 = scmp.ne.s32.totalorder %s40, %s43
      %p52 = scmp.eq.s32.totalorder %s21, 1
      %p53 = por %p51, %p52
      %p54 = scmp.ne.s32.totalorder %s43, %s44
      %p55 = scmp.eq.s32.totalorder %s21, 0
      %p56 = por %p54, %p55
      %p57 = scmp.ne.s32.totalorder %s43, %s44
      %p58 = scmp.eq.s32.totalorder %s22, 1
      %p59 = por %p57, %p58
      %p61 = scmp.ne.s32.totalorder %s44, %s60
      %p62 = scmp.eq.s32.totalorder %s22, 0
      %p63 = por %p61, %p62
      %s65 = sadd.s32 %s64, 1
      %p68 = scmp.eq.s32.totalorder %s16, 1
      %p69 = scmp.ne.s32.totalorder %s64, %s66
      %p70 = scmp.eq.s32.totalorder %s16, 0
      %p71 = por %p69, %p70
      %p72 = scmp.ne.s32.totalorder %s64, %s66
      %p73 = scmp.eq.s32.totalorder %s21, 1
      %p74 = por %p72, %p73
      %p75 = scmp.ne.s32.totalorder %s66, %s67
      %p76 = scmp.eq.s32.totalorder %s21, 0
      %p77 = por %p75, %p76
      %p78 = scmp.ne.s32.totalorder %s66, %s67
      %p79 = scmp.eq.s32.totalorder %s22, 1
      %p80 = por %p78, %p79
      %p82 = scmp.ne.s32.totalorder %s67, %s81
      %p83 = scmp.eq.s32.totalorder %s22, 0
      %p84 = por %p82, %p83
      %s85 = ssub.s32 %s23, %s35
      %p86 = scmp.eq.s32.totalorder %s85, 0
      %s88 = sadd.s32 %s87, 1
      %s89 = scalar_select %p86, %s87, %s88
      %p92 = pneg %p86
      %p93 = scmp.eq.s32.totalorder %s16, 1
      %p94 = por %p92, %p93
      %p95 = scmp.ne.s32.totalorder %s87, %s90
      %p96 = scmp.eq.s32.totalorder %s16, 0
      %p97 = por %p95, %p96
      %p98 = scmp.ne.s32.totalorder %s87, %s90
      %p99 = scmp.eq.s32.totalorder %s21, 1
      %p100 = por %p98, %p99
      %p101 = scmp.ne.s32.totalorder %s90, %s91
      %p102 = scmp.eq.s32.totalorder %s21, 0
      %p103 = por %p101, %p102
      %p104 = scmp.ne.s32.totalorder %s90, %s91
      %p105 = scmp.eq.s32.totalorder %s22, 1
      %p106 = por %p104, %p105
      %p108 = scmp.ne.s32.totalorder %s91, %s107
      %p109 = scmp.eq.s32.totalorder %s22, 0
      %p110 = por %p108, %p109
      %s111 = ssub.s32 %s23, %s35
      %p112 = scmp.eq.s32.totalorder %s111, 0
      %s114 = sadd.s32 %s113, 1
      %s115 = scalar_select %p112, %s113, %s114
      %p118 = pneg %p112
      %p119 = scmp.eq.s32.totalorder %s16, 1
      %p120 = por %p118, %p119
      %p121 = scmp.ne.s32.totalorder %s113, %s116
      %p122 = scmp.eq.s32.totalorder %s16, 0
      %p123 = por %p121, %p122
      %p124 = scmp.ne.s32.totalorder %s113, %s116
      %p125 = scmp.eq.s32.totalorder %s21, 1
      %p126 = por %p124, %p125
      %p127 = scmp.ne.s32.totalorder %s116, %s117
      %p128 = scmp.eq.s32.totalorder %s21, 0
      %p129 = por %p127, %p128
      %p130 = scmp.ne.s32.totalorder %s116, %s117
      %p131 = scmp.eq.s32.totalorder %s22, 1
      %p132 = por %p130, %p131
      %p134 = scmp.ne.s32.totalorder %s117, %s133
      %p135 = scmp.eq.s32.totalorder %s22, 0
      %p136 = por %p134, %p135
      %s137 = ssub.s32 %s23, %s35
      %s138 = ssub.s32 %s24, %s31
      %s139 = sor.u32 %s137, %s138
      %p140 = scmp.eq.s32.totalorder %s139, 0
      %s142 = sadd.s32 %s141, 1
      %s143 = scalar_select %p140, %s141, %s142
      %p146 = pneg %p140
      %p147 = scmp.eq.s32.totalorder %s16, 1
      %p148 = por %p146, %p147
      %p149 = scmp.ne.s32.totalorder %s141, %s144
      %p150 = scmp.eq.s32.totalorder %s16, 0
      %p151 = por %p149, %p150
      %p152 = scmp.ne.s32.totalorder %s141, %s144
      %p153 = scmp.eq.s32.totalorder %s21, 1
      %p154 = por %p152, %p153
      %p155 = scmp.ne.s32.totalorder %s144, %s145
      %p156 = scmp.eq.s32.totalorder %s21, 0
      %p157 = por %p155, %p156
      %p158 = scmp.ne.s32.totalorder %s144, %s145
      %p159 = scmp.eq.s32.totalorder %s22, 1
      %p160 = por %p158, %p159
      %p162 = scmp.ne.s32.totalorder %s145, %s161
      %p163 = scmp.eq.s32.totalorder %s22, 0
      %p164 = por %p162, %p163
      %p165 = scmp.le.s32.totalorder 1, %s16
      %p166 = scmp.lt.s32.totalorder %s16, 3
      %p167 = pnand %p165, %p166
      %p168 = pneg %p167
      // Predicated region
      $region9: #{tpu_custom_call.1} parent=5 // pred_check
        _
      $region10: #{tpu_custom_call.1} parent=5 // pred_check_branch
        %170 = sbr.rel (%p167) target = $region12
      $region11: #{tpu_custom_call.1} parent=5 // pred_region
        %s171 = ssub.s32 %s16, 1
        // Predicated region
        $region13: #{tpu_custom_call.1} parent=11 // pred_check
          %p172 = pneg %p77
        $region14: #{tpu_custom_call.1} parent=11 // pred_check_branch
          %174 = sbr.rel (%p172) target = $region16
        $region15: #{tpu_custom_call.1} parent=11 // pred_region
          _
        $region16: #{tpu_custom_call.1} parent=11 // pred_fallthru
          _
      $region12: #{tpu_custom_call.1} parent=5 // pred_fallthru
        _
      %p175 = scmp.lt.s32.totalorder %s16, 2
      // Predicated region
      $region17: #{tpu_custom_call.1} parent=5 // pred_check
        %p176 = pneg %p175
      $region18: #{tpu_custom_call.1} parent=5 // pred_check_branch
        %178 = sbr.rel (%p176) target = $region20
      $region19: #{tpu_custom_call.1} parent=5 // pred_region
        // Predicated region
        $region21: #{tpu_custom_call.1} parent=19 // pred_check
          %p179 = pneg %p50
        $region22: #{tpu_custom_call.1} parent=19 // pred_check_branch
          %181 = sbr.rel (%p179) target = $region24
        $region23: #{tpu_custom_call.1} parent=19 // pred_region
          %s182 = sand.u32 %s40, 1
          %s183 = scalar_lea.sflag [#allocation3], %s182
          %s184 = sand.u32 %s40, 1
          %s185 = smul.addr %s184, 128
          %s186 = scalar_lea.vmem [#allocation2], %s185
          %s187 = smul.u32 2, %s24
          %s189 = ssub.s32 2048, 2048
          %190 = vsyncadd %s183, %s189
          %s191 = smul.addr %s23, 16
          %s192 = sadd.s32 %s187, %s191
          %s193 = smul.addr %s192, 128
          %s194 = scalar_lea.hbm %s0, %s193
          %s195 = sshll.u32 %s186, 4
          %s196 = int_to_ptr.vmem [resolvable:$true] %s195
          %201 = dma.hbm_to_vmem [thread:$0]  %s194, 2048, %s196, %s183, 256, 256, 16
        $region24: #{tpu_custom_call.1} parent=19 // pred_fallthru
          _
        // Predicated region
        $region25: #{tpu_custom_call.1} parent=19 // pred_check
          %p202 = pneg %p97
        $region26: #{tpu_custom_call.1} parent=19 // pred_check_branch
          %204 = sbr.rel (%p202) target = $region28
        $region27: #{tpu_custom_call.1} parent=19 // pred_region
          %p205 = scmp.lt.s32.totalorder %s23, 1
          %s206 = scalar_select %p205, %s23, 1
          %s207 = smul.addr %s206, 8
          %s208 = scalar_lea.vmem %s2, %s207
        $region28: #{tpu_custom_call.1} parent=19 // pred_fallthru
          _
        // Predicated region
        $region29: #{tpu_custom_call.1} parent=19 // pred_check
          %p209 = pneg %p123
        $region30: #{tpu_custom_call.1} parent=19 // pred_check_branch
          %211 = sbr.rel (%p209) target = $region32
        $region31: #{tpu_custom_call.1} parent=19 // pred_region
          %p212 = scmp.lt.s32.totalorder %s23, 1
          %s213 = scalar_select %p212, %s23, 1
          %s214 = smul.addr %s213, 8
          %s215 = scalar_lea.vmem %s3, %s214
        $region32: #{tpu_custom_call.1} parent=19 // pred_fallthru
          _
      $region20: #{tpu_custom_call.1} parent=5 // pred_fallthru
        _
      %p216 = scmp.le.s32.totalorder 1, %s16
      %p217 = scmp.lt.s32.totalorder %s16, 3
      %p218 = pnand %p216, %p217
      %p219 = pneg %p218
      // Predicated region
      $region33: #{tpu_custom_call.1} parent=5 // pred_check
        _
      $region34: #{tpu_custom_call.1} parent=5 // pred_check_branch
        %221 = sbr.rel (%p218) target = $region36
      $region35: #{tpu_custom_call.1} parent=5 // pred_region
        %s222 = ssub.s32 %s16, 1
        %s223 = sand.u32 %s43, 1
        %s224 = scalar_lea.sflag [#allocation3], %s223
        %s225 = sand.u32 %s43, 1
        %s226 = smul.addr %s225, 128
        %s227 = scalar_lea.vmem [#allocation2], %s226
        // Predicated region
        $region37: #{tpu_custom_call.1} parent=35 // pred_check
          %p228 = pneg %p56
        $region38: #{tpu_custom_call.1} parent=35 // pred_check_branch
          %230 = sbr.rel (%p228) target = $region40
        $region39: #{tpu_custom_call.1} parent=35 // pred_region
          %231 = dma.done %s224, 2048
        $region40: #{tpu_custom_call.1} parent=35 // pred_fallthru
          _
        %s232 = sand.u32 %s43, 1
        %s233 = scalar_lea.sflag [#allocation3], %s232
        %s234 = sand.u32 %s43, 1
        %s235 = smul.addr %s234, 128
        %s236 = scalar_lea.vmem [#allocation2], %s235
        %p237 = pneg %p56
        %p238 = pneg %p53
        %p239 = pneg %p77
        %p240 = pneg %p74
        %p241 = scmp.lt.s32.totalorder %s25, 1
        %s242 = scalar_select %p241, %s25, 1
        %s243 = smul.addr %s242, 8
        %s244 = scalar_lea.vmem %s2, %s243
        %p245 = pneg %p103
        %p246 = pneg %p100
        %p247 = scmp.lt.s32.totalorder %s25, 1
        %s248 = scalar_select %p247, %s25, 1
        %s249 = smul.addr %s248, 8
        %s250 = scalar_lea.vmem %s3, %s249
        %p251 = pneg %p129
        %p252 = pneg %p126
        %p253 = pneg %p157
        %p254 = pneg %p154
        %s255 = sand.u32 %s144, 1
        %s256 = scalar_lea.sflag [#allocation4], %s255
        %s257 = sand.u32 %s144, 1
        %s258 = smul.addr %s257, 16
        %s259 = scalar_lea.vmem [#allocation5], %s258
        %s260 = smul.u32 2, %s26
        %p261 = scmp.lt.s32.totalorder %s25, 1
        %s262 = scalar_select %p261, %s25, 1
        %s263 = smul.addr %s262, 8
        %s264 = scalar_lea.vmem %s2, %s263
        %p265 = scmp.lt.s32.totalorder %s25, 1
        %s266 = scalar_select %p265, %s25, 1
        %s267 = smul.addr %s266, 8
        %s268 = scalar_lea.vmem %s3, %s267
        %s269 = smul.u32 2, %s26
        %v270 = vld [vmem:[%s227] sm:$0xff]
        %v271 = vld [vmem:[%s227 + $0x8] sm:$0xff]
        %v272 = vld [vmem:[%s227 + $0x10] sm:$0xff]
        %v273 = vld [vmem:[%s227 + $0x18] sm:$0xff]
        %v274 = vld [vmem:[%s227 + $0x20] sm:$0xff]
        %v275 = vld [vmem:[%s227 + $0x28] sm:$0xff]
        %v276 = vld [vmem:[%s227 + $0x30] sm:$0xff]
        %v277 = vld [vmem:[%s227 + $0x38] sm:$0xff]
        %v278 = vld [vmem:[%s227 + $0x40] sm:$0xff]
        %v279 = vld [vmem:[%s227 + $0x48] sm:$0xff]
        %v280 = vld [vmem:[%s227 + $0x50] sm:$0xff]
        %v281 = vld [vmem:[%s227 + $0x58] sm:$0xff]
        %v282 = vld [vmem:[%s227 + $0x60] sm:$0xff]
        %v283 = vld [vmem:[%s227 + $0x68] sm:$0xff]
        %v284 = vld [vmem:[%s227 + $0x70] sm:$0xff]
        %v285 = vld [vmem:[%s227 + $0x78] sm:$0xff]
        %v286 = vld [vmem:[%s1] sm:$0xff]
        %vm287 = vcmask 523264
        %v289 = vsel %vm287, %v286, 0
        %291 = vmatprep.subr.mxu0 %v271
        %292 = vmatpush1.msra.mxu0 %v270
        %293 = vmatprep.subr.mxu0 %v273
        %294 = vmatpush1.msra.mxu0 %v272
        %295 = vmatprep.subr.mxu0 %v275
        %296 = vmatpush1.msra.mxu0 %v274
        %297 = vmatprep.subr.mxu0 %v277
        %298 = vmatpush1.msra.mxu0 %v276
        %299 = vmatprep.subr.mxu0 %v279
        %300 = vmatpush1.msra.mxu0 %v278
        %301 = vmatprep.subr.mxu0 %v281
        %302 = vmatpush1.msra.mxu0 %v280
        %303 = vmatprep.subr.mxu0 %v283
        %304 = vmatpush1.msra.mxu0 %v282
        %305 = vmatprep.subr.mxu0 %v285
        %306 = vmatpush1.msra.mxu0 %v284
        %307 = vmatprep.subr.mxu0 0.0
        %308 = vmatpush1.msra.mxu0 0.0
        %309 = vmatprep.subr.mxu0 0.0
        %310 = vmatpush1.msra.mxu0 0.0
        %311 = vmatprep.subr.mxu0 0.0
        %312 = vmatpush1.msra.mxu0 0.0
        %313 = vmatprep.subr.mxu0 0.0
        %314 = vmatpush1.msra.mxu0 0.0
        %315 = vmatprep.subr.mxu0 0.0
        %316 = vmatpush1.msra.mxu0 0.0
        %317 = vmatprep.subr.mxu0 0.0
        %318 = vmatpush1.msra.mxu0 0.0
        %319 = vmatprep.subr.mxu0 0.0
        %320 = vmatpush1.msra.mxu0 0.0
        %321 = vmatprep.subr.mxu0 0.0
        %322 = vmatpush1.msra.mxu0 0.0
        %323 = vmatprep.subr.mxu0 0.0
        %324 = vmatpush1.msra.mxu0 0.0
        %325 = vmatprep.subr.mxu0 0.0
        %326 = vmatpush1.msra.mxu0 0.0
        %327 = vmatprep.subr.mxu0 0.0
        %328 = vmatpush1.msra.mxu0 0.0
        %329 = vmatprep.subr.mxu0 0.0
        %330 = vmatpush1.msra.mxu0 0.0
        %331 = vmatprep.subr.mxu0 0.0
        %332 = vmatpush1.msra.mxu0 0.0
        %333 = vmatprep.subr.mxu0 0.0
        %334 = vmatpush1.msra.mxu0 0.0
        %335 = vmatprep.subr.mxu0 0.0
        %336 = vmatpush1.msra.mxu0 0.0
        %337 = vmatprep.subr.mxu0 0.0
        %338 = vmatpush1.msra.mxu0 0.0
        %339 = vmatprep.subr.mxu0 0.0
        %340 = vmatpush1.msra.mxu0 0.0
        %341 = vmatprep.subr.mxu0 0.0
        %342 = vmatpush1.msra.mxu0 0.0
        %343 = vmatprep.subr.mxu0 0.0
        %344 = vmatpush1.msra.mxu0 0.0
        %345 = vmatprep.subr.mxu0 0.0
        %346 = vmatpush1.msra.mxu0 0.0
        %347 = vmatprep.subr.mxu0 0.0
        %348 = vmatpush1.msra.mxu0 0.0
        %349 = vmatprep.subr.mxu0 0.0
        %350 = vmatpush1.msra.mxu0 0.0
        %351 = vmatprep.subr.mxu0 0.0
        %352 = vmatpush1.msra.mxu0 0.0
        %353 = vmatprep.subr.mxu0 0.0
        %354 = vmatpush1.msra.mxu0 0.0
        %355 = vmatprep.mubr.f32.mxu0 0.0
        %356 = vmatmul.mubr.f32.gmra.mrb[0].mxu0 %v289
        %v357 = vpop.f32.mrb[0].mxu0
        %v358 = vadd.f32 0.0, %v357
        %v359 = vpop.f32.mrb[0].mxu0
        %v360 = vadd.f32 0.0, %v359
        %361 = vdwg.mxu0
        %v362 = vld [vmem:[%s264] sm:$0xff]
        %364 = vset.pattern.permute.xlu0 0
        %365 = vperm.xlu0 %364, %v362
        %v366 = vpop.permute.xlu0 %365
        %v368 = vmul.f32 %v366, %v358
        %v369 = vmul.f32 %v366, %v360
        %v370 = vld [vmem:[%s268] sm:$0xff]
        %372 = vset.pattern.permute.xlu0 0
        %373 = vperm.xlu0 %372, %v370
        %v374 = vpop.permute.xlu0 %373
        %v376 = vadd.f32 %v368, %v374
        %v377 = vadd.f32 %v369, %v374
        %vm378 = vcmp.ge.f32.partialorder %v376, 0.0
        %vm379 = vcmp.ge.f32.partialorder %v377, 0.0
        %v380 = vmul.f32 %v376, 0.2
        %v381 = vmul.f32 %v377, 0.2
        %v382 = vsel %vm378, %v376, %v380
        %v383 = vsel %vm379, %v377, %v381
        %384 = vst [vmem:[%s259] sm:$0xff] %v382
        %385 = vst [vmem:[%s259 + $0x8] sm:$0xff] %v383
        %s386 = sand.u32 %s144, 1
        %s387 = scalar_lea.sflag [#allocation4], %s386
        %s388 = sand.u32 %s144, 1
        %s389 = smul.addr %s388, 16
        %s390 = scalar_lea.vmem [#allocation5], %s389
        // Predicated region
        $region41: #{tpu_custom_call.1} parent=35 // pred_check
          %p391 = pneg %p154
        $region42: #{tpu_custom_call.1} parent=35 // pred_check_branch
          %393 = sbr.rel (%p391) target = $region44
        $region43: #{tpu_custom_call.1} parent=35 // pred_region
          %s394 = smul.u32 2, %s26
          %s396 = ssub.s32 256, 256
          %397 = vsyncadd %s387, %s396
          %s398 = smul.addr %s25, 2
          %s399 = sadd.s32 %s394, %s398
          %s400 = smul.addr %s399, 128
          %s401 = scalar_lea.hbm %s4, %s400
          %s403 = sshll.u32 %s390, 4
          %s404 = int_to_ptr.vmem [resolvable:$true] %s403
          %406 = dma.vmem_to_hbm [thread:$0]  %s404, 256, %s401, %s387
        $region44: #{tpu_custom_call.1} parent=35 // pred_fallthru
          _
      $region36: #{tpu_custom_call.1} parent=5 // pred_fallthru
        _
      %p407 = scmp.le.s32.totalorder 2, %s16
      // Predicated region
      $region45: #{tpu_custom_call.1} parent=5 // pred_check
        %p408 = pneg %p407
      $region46: #{tpu_custom_call.1} parent=5 // pred_check_branch
        %410 = sbr.rel (%p408) target = $region48
      $region47: #{tpu_custom_call.1} parent=5 // pred_region
        %s411 = ssub.s32 %s16, 2
        // Predicated region
        $region49: #{tpu_custom_call.1} parent=47 // pred_check
          %p412 = pneg %p160
        $region50: #{tpu_custom_call.1} parent=47 // pred_check_branch
          %414 = sbr.rel (%p412) target = $region52
        $region51: #{tpu_custom_call.1} parent=47 // pred_region
          %s415 = sand.u32 %s145, 1
          %s416 = scalar_lea.sflag [#allocation4], %s415
          %s417 = sand.u32 %s145, 1
          %s418 = smul.addr %s417, 16
          %s419 = scalar_lea.vmem [#allocation5], %s418
          %420 = dma.done %s416, 256
        $region52: #{tpu_custom_call.1} parent=47 // pred_fallthru
          _
      $region48: #{tpu_custom_call.1} parent=5 // pred_fallthru
        _
    $region6: #{tpu_custom_call.1} parent=1 // loop_footer
      %s20 = sadd.s32 1, %s16
    $region7: #{tpu_custom_call.1} parent=1 // loop_footer_branch
      %15 = sbr.rel target = $region3
    $region8: #{tpu_custom_call.1} parent=1 // loop_exit
      _
    %421 = vsyncpa [#allocation3], 1
    %s422 = scalar_lea.sflag [#allocation3], 1
    %423 = vsyncpa %s422, 1
    %424 = vsyncpa [#allocation4], 1
    %s425 = scalar_lea.sflag [#allocation4], 1
    %426 = vsyncpa %s425, 1

</llo_original>
